<compile_context>
chip_gen: v5e
topology: v5e:2x2
jax: 0.10.0
libtpu: 0.0.40
codegen_flags: <defaults>
</compile_context>

<pallas_src>
import jax
import jax.numpy as jnp
from jax.experimental import pallas as pl
from jax.experimental.pallas import tpu as pltpu


# ----------------------------- Pallas kernel -------------------------------
def qnet_kernel(obs_ref, act_ref, w1o_ref, w1a_ref, b1_ref,
                w2_ref, b2_ref, w3_ref, b3_ref, o_ref):
    # Layer 1 with fused concat: x @ W1 == obs @ W1[:P] + act @ W1[P:]
    # (MXU dots accumulate in f32 even when the operands are bf16.)
    h1 = jnp.dot(obs_ref[...], w1o_ref[...], preferred_element_type=jnp.float32)
    h1 = h1 + jnp.dot(act_ref[...], w1a_ref[...], preferred_element_type=jnp.float32)
    h1 = jnp.maximum(h1 + b1_ref[...], 0.0)              # f32 bias-add + ReLU (VPU)

    # Layer 2 (MXU, f32 accumulation) + ReLU
    h2 = jnp.dot(h1.astype(w2_ref.dtype), w2_ref[...],
                 preferred_element_type=jnp.float32) + b2_ref[...]
    h2 = jnp.maximum(h2, 0.0)

    # Layer 3 (hidden -> 1): VPU multiply + lane reduce instead of an N=1 MXU dot.
    out = jnp.sum(h2 * w3_ref[...], axis=-1, keepdims=True) + b3_ref[0, 0]
    o_ref[...] = out.astype(o_ref.dtype)


def _round_up(x, m):
    return ((x + m - 1) // m) * m


def qnetwork_forward(action, observation, params, *,
                     tile_batch=2048, compute_dtype=jnp.bfloat16):
    """Exact forward semantics of QNetwork.forward(action, observation).

    compute_dtype controls the dtype of the streamed inputs / matmul weights
    (bf16 halves HBM traffic for this mem-bound kernel; f32 reproduces the
    torch module bit-for-bit up to MXU rounding). Accumulation is always f32.
    """
    assert action.shape[0] == observation.shape[0], "Unconsistent batch size"
    w1_obs, w1_act, b1, w2, b2, w3_row, b3 = params

    B, A = action.shape
    P = observation.shape[1]
    H = w2.shape[1]

    # Batch tile: multiple of 8 (sublane), >= 8, at most ceil(B/2) rounded up so the
    # grid has >= 2 steps for B > 8 (v7x megacore), capped at tile_batch (default 2048:
    # near HBM roofline, still fits v5e scoped VMEM even with 128-lane padding).
    TB = min(tile_batch, max(8, _round_up(pl.cdiv(B, 2), 8)))
    grid = (pl.cdiv(B, TB),)   # ragged last block handled by Pallas (masked stores)

    # Cast the HBM-dominant operands; biases and the tiny (1, H) head row stay f32.
    obs = observation.astype(compute_dtype)
    act = action.astype(compute_dtype)
    w1o = w1_obs.astype(compute_dtype)
    w1a = w1_act.astype(compute_dtype)
    w2c = w2.astype(compute_dtype)

    # Advisory cost estimate: rows actually processed, weights counted once.
    in_bytes = jnp.dtype(compute_dtype).itemsize
    rows = grid[0] * TB
    flops = 2 * rows * ((P + A) * H + H * H + H)
    bytes_accessed = (rows * (P + A) * in_bytes                 # obs/act streams
                      + ((P + A) * H + H * H) * in_bytes        # matmul weights (once)
                      + (3 * H + 1) * 4                         # biases + head row (f32)
                      + B * 4)                                  # output
    cost = pl.CostEstimate(flops=flops, transcendentals=0,
                           bytes_accessed=bytes_accessed)

    out = pl.pallas_call(
        qnet_kernel,
        out_shape=jax.ShapeDtypeStruct((B, 1), jnp.float32),
        grid=grid,
        in_specs=[
            # TODO(synk): if a bundle dump shows exposed DMA waits at large TB, add
            #             pipeline_mode=pl.Buffered(3) on these two streaming specs.
            pl.BlockSpec((TB, P), lambda i: (i, 0)),            # observation tile
            pl.BlockSpec((TB, A), lambda i: (i, 0)),            # action tile
            pl.BlockSpec((P, H), lambda i: (0, 0)),             # W1[:P]  (VMEM-resident)
            pl.BlockSpec((A, H), lambda i: (0, 0)),             # W1[P:]  (VMEM-resident)
            pl.BlockSpec((1, H), lambda i: (0, 0)),             # b1      (resident)
            pl.BlockSpec((H, H), lambda i: (0, 0)),             # W2      (resident)
            pl.BlockSpec((1, H), lambda i: (0, 0)),             # b2      (resident)
            pl.BlockSpec((1, H), lambda i: (0, 0)),             # W3 row  (resident)
            pl.BlockSpec(memory_space=pltpu.MemorySpace.SMEM),  # b3 scalar
        ],
        # TODO(synk): a lane-dense (1, TB) output row per step would replace the masked
        #             (TB, 1) column stores, but output is only 4 B/row vs ~80 B/row input.
        # TODO(synk): if the producer can hand obs/act pre-transposed ((P,B)/(A,B)), a
        #             transposed-layout kernel would put batch on the lane axis.
        out_specs=pl.BlockSpec((TB, 1), lambda i: (i, 0)),
        compiler_params=pltpu.CompilerParams(
            dimension_semantics=("parallel",),                  # shard batch on v7x 2 TCs
            vmem_limit_bytes=32 * 1024 * 1024),
        cost_estimate=cost,
    )(obs, act, w1o, w1a, b1, w2c, b2, w3_row, b3)

    return out


# ------------------------- deterministic parameters -------------------------
def orthogonal_init(key, out_dim, in_dim):
    """Mimics torch.nn.init.orthogonal_ semantics (row/col-orthonormal matrix)."""
    a = jax.random.normal(key, (out_dim, in_dim), dtype=jnp.float32)
    if out_dim < in_dim:
        q, r = jnp.linalg.qr(a.T)
        q = q * jnp.sign(jnp.diag(r))
        w = q.T
    else:
        q, r = jnp.linalg.qr(a)
        q = q * jnp.sign(jnp.diag(r))
        w = q
    return w  # shape (out_dim, in_dim), like torch Linear.weight


def make_params(key, hidden_dim, projection_dim, action_shape):
    in_dim = projection_dim + action_shape
    k1, k2, k3 = jax.random.split(key, 3)
    # torch Linear weight is (out, in); store transposed (in, out) for x @ W.
    w1 = orthogonal_init(k1, hidden_dim, in_dim).T            # (in_dim, hidden)
    w1_obs = w1[:projection_dim]                              # (P, hidden)
    w1_act = w1[projection_dim:]                              # (A, hidden)
    w2 = orthogonal_init(k2, hidden_dim, hidden_dim).T        # (hidden, hidden)
    w3_row = orthogonal_init(k3, 1, hidden_dim)               # (1, hidden) row
    # biases filled with 0.0 (as in init_weights)
    b1 = jnp.zeros((1, hidden_dim), jnp.float32)
    b2 = jnp.zeros((1, hidden_dim), jnp.float32)
    b3 = jnp.zeros((1, 1), jnp.float32)                       # SMEM scalar
    return (w1_obs, w1_act, b1, w2, b2, w3_row, b3)


# ----------------------------------- main -----------------------------------
if __name__ == "__main__":
    hidden_dim = 32
    projection_dim = 32
    action_shape = 8
    batch = 20   # not a multiple of the tile: exercises the ragged last block + 2-step grid

    key = jax.random.PRNGKey(0)
    k_par, k_act, k_obs = jax.random.split(key, 3)

    params = make_params(k_par, hidden_dim, projection_dim, action_shape)
    action = jax.random.normal(k_act, (batch, action_shape), dtype=jnp.float32)
    observation = jax.random.normal(k_obs, (batch, projection_dim), dtype=jnp.float32)

    # pure-JAX f32 reference (same math as the torch module)
    w1_obs, w1_act, b1, w2, b2, w3_row, b3 = params
    w1_full = jnp.concatenate([w1_obs, w1_act], axis=0)
    x = jnp.concatenate([observation, action], axis=1)
    ref = jnp.maximum(x @ w1_full + b1, 0.0)
    ref = jnp.maximum(ref @ w2 + b2, 0.0)
    ref = ref @ w3_row.T + b3[0, 0]

    # 1) exact f32 path (torch-module semantics)
    q_f32 = qnetwork_forward(action, observation, params, compute_dtype=jnp.float32)
    q_f32 = jax.block_until_ready(q_f32)
    assert q_f32.shape == (batch, 1)
    assert jnp.allclose(q_f32, ref, atol=1e-4, rtol=1e-4)

    # 2) default bf16-input path (halves HBM traffic; f32 accumulation in the MXU)
    q_bf16 = qnetwork_forward(action, observation, params)
    q_bf16 = jax.block_until_ready(q_bf16)
    assert q_bf16.shape == (batch, 1)
    assert jnp.allclose(q_bf16, ref, atol=3e-2, rtol=3e-2)

    print("KERNEL_OK")
</pallas_src>

<mosaic_0001>
module attributes {stable_mosaic.version = 11 : i64} {
  func.func @qnet_kernel(%arg0: i32, %arg1: memref<16x32xf32, #tpu.memory_space<vmem>>, %arg2: memref<16x8xf32, #tpu.memory_space<vmem>>, %arg3: memref<32x32xf32, #tpu.memory_space<vmem>>, %arg4: memref<8x32xf32, #tpu.memory_space<vmem>>, %arg5: memref<1x32xf32, #tpu.memory_space<vmem>>, %arg6: memref<32x32xf32, #tpu.memory_space<vmem>>, %arg7: memref<1x32xf32, #tpu.memory_space<vmem>>, %arg8: memref<1x32xf32, #tpu.memory_space<vmem>>, %arg9: memref<1x1xf32, #tpu.memory_space<smem>>, %arg10: memref<16x1xf32, #tpu.memory_space<vmem>>) attributes {dimension_semantics = [#tpu.dimension_semantics<parallel>], iteration_bounds = array<i64: 2>, scalar_prefetch = 0 : i64, scratch_operands = 0 : i64, tpu.core_type = #tpu.core_type<tc>, window_params = [{transform_indices = @transform_0, window_bounds = array<i64: 16, 32>}, {transform_indices = @transform_1, window_bounds = array<i64: 16, 8>}, {pipeline_mode = #tpu.pipeline_mode<synchronous>, transform_indices = @transform_2, window_bounds = array<i64: 32, 32>}, {pipeline_mode = #tpu.pipeline_mode<synchronous>, transform_indices = @transform_3, window_bounds = array<i64: 8, 32>}, {pipeline_mode = #tpu.pipeline_mode<synchronous>, transform_indices = @transform_4, window_bounds = array<i64: 1, 32>}, {pipeline_mode = #tpu.pipeline_mode<synchronous>, transform_indices = @transform_5, window_bounds = array<i64: 32, 32>}, {pipeline_mode = #tpu.pipeline_mode<synchronous>, transform_indices = @transform_6, window_bounds = array<i64: 1, 32>}, {pipeline_mode = #tpu.pipeline_mode<synchronous>, transform_indices = @transform_7, window_bounds = array<i64: 1, 32>}, {transform_indices = @transform_8, window_bounds = array<i64: 1, 1>}, {transform_indices = @transform_9, window_bounds = array<i64: 16, 1>}]} {
    %c0 = arith.constant 0 : index
    %c0_0 = arith.constant 0 : index
    %0 = vector.load %arg1[%c0, %c0_0] : memref<16x32xf32, #tpu.memory_space<vmem>>, vector<16x32xf32>
    %c0_1 = arith.constant 0 : index
    %c0_2 = arith.constant 0 : index
    %1 = vector.load %arg3[%c0_1, %c0_2] : memref<32x32xf32, #tpu.memory_space<vmem>>, vector<32x32xf32>
    %cst = arith.constant dense<0.000000e+00> : vector<16x32xf32>
    %2 = tpu.matmul %0, %1, %cst {dimension_numbers = #tpu.dot_dimension_numbers<[1], [0], [0], [1], [0, 0, 1, 1], [], []>} : vector<16x32xf32>, vector<32x32xf32>, vector<16x32xf32> -> vector<16x32xf32>
    %c0_3 = arith.constant 0 : index
    %c0_4 = arith.constant 0 : index
    %3 = vector.load %arg2[%c0_3, %c0_4] : memref<16x8xf32, #tpu.memory_space<vmem>>, vector<16x8xf32>
    %c0_5 = arith.constant 0 : index
    %c0_6 = arith.constant 0 : index
    %4 = vector.load %arg4[%c0_5, %c0_6] : memref<8x32xf32, #tpu.memory_space<vmem>>, vector<8x32xf32>
    %cst_7 = arith.constant dense<0.000000e+00> : vector<16x32xf32>
    %5 = tpu.matmul %3, %4, %cst_7 {dimension_numbers = #tpu.dot_dimension_numbers<[1], [0], [0], [1], [0, 0, 1, 1], [], []>} : vector<16x8xf32>, vector<8x32xf32>, vector<16x32xf32> -> vector<16x32xf32>
    %6 = arith.addf %2, %5 : vector<16x32xf32>
    %c0_8 = arith.constant 0 : index
    %c0_9 = arith.constant 0 : index
    %7 = vector.load %arg5[%c0_8, %c0_9] : memref<1x32xf32, #tpu.memory_space<vmem>>, vector<1x32xf32>
    %8 = vector.broadcast %7 : vector<1x32xf32> to vector<16x32xf32>
    %9 = arith.addf %6, %8 : vector<16x32xf32>
    %cst_10 = arith.constant 0.000000e+00 : f32
    %10 = vector.broadcast %cst_10 : f32 to vector<16x32xf32>
    %11 = arith.maximumf %9, %10 : vector<16x32xf32>
    %c0_11 = arith.constant 0 : index
    %c0_12 = arith.constant 0 : index
    %12 = vector.load %arg6[%c0_11, %c0_12] : memref<32x32xf32, #tpu.memory_space<vmem>>, vector<32x32xf32>
    %cst_13 = arith.constant dense<0.000000e+00> : vector<16x32xf32>
    %13 = tpu.matmul %11, %12, %cst_13 {dimension_numbers = #tpu.dot_dimension_numbers<[1], [0], [0], [1], [0, 0, 1, 1], [], []>} : vector<16x32xf32>, vector<32x32xf32>, vector<16x32xf32> -> vector<16x32xf32>
    %c0_14 = arith.constant 0 : index
    %c0_15 = arith.constant 0 : index
    %14 = vector.load %arg7[%c0_14, %c0_15] : memref<1x32xf32, #tpu.memory_space<vmem>>, vector<1x32xf32>
    %15 = vector.broadcast %14 : vector<1x32xf32> to vector<16x32xf32>
    %16 = arith.addf %13, %15 : vector<16x32xf32>
    %cst_16 = arith.constant 0.000000e+00 : f32
    %17 = vector.broadcast %cst_16 : f32 to vector<16x32xf32>
    %18 = arith.maximumf %16, %17 : vector<16x32xf32>
    %c0_17 = arith.constant 0 : index
    %c0_18 = arith.constant 0 : index
    %19 = vector.load %arg8[%c0_17, %c0_18] : memref<1x32xf32, #tpu.memory_space<vmem>>, vector<1x32xf32>
    %20 = vector.broadcast %19 : vector<1x32xf32> to vector<16x32xf32>
    %21 = arith.mulf %18, %20 : vector<16x32xf32>
    %cst_19 = arith.constant dense<0.000000e+00> : vector<16xf32>
    %22 = vector.multi_reduction <add>, %21, %cst_19 [1] : vector<16x32xf32> to vector<16xf32>
    %23 = vector.shape_cast %22 : vector<16xf32> to vector<16x1xf32>
    %c0_20 = arith.constant 0 : index
    %c0_21 = arith.constant 0 : index
    %24 = memref.load %arg9[%c0_20, %c0_21] : memref<1x1xf32, #tpu.memory_space<smem>>
    %25 = vector.broadcast %24 : f32 to vector<16x1xf32>
    %26 = arith.addf %23, %25 : vector<16x1xf32>
    %c0_22 = arith.constant 0 : index
    %c0_23 = arith.constant 0 : index
    %27 = vector.load %arg10[%c0_22, %c0_23] : memref<16x1xf32, #tpu.memory_space<vmem>>, vector<16x1xf32>
    tpu.vector_store %arg10[%c0_22, %c0_23], %26 {strides = array<i32>} : memref<16x1xf32, #tpu.memory_space<vmem>>, vector<16x1xf32>,
    return
  }
  func.func @transform_0(%arg0: i32) -> (i32, i32) {
    %c0_i32 = arith.constant 0 : i32
    %c0_i32_0 = arith.constant 0 : i32
    return %arg0, %c0_i32 : i32, i32
  }
  func.func @transform_1(%arg0: i32) -> (i32, i32) {
    %c0_i32 = arith.constant 0 : i32
    %c0_i32_0 = arith.constant 0 : i32
    return %arg0, %c0_i32 : i32, i32
  }
  func.func @transform_2(%arg0: i32) -> (i32, i32) {
    %c0_i32 = arith.constant 0 : i32
    %c0_i32_0 = arith.constant 0 : i32
    %c0_i32_1 = arith.constant 0 : i32
    return %c0_i32, %c0_i32_0 : i32, i32
  }
  func.func @transform_3(%arg0: i32) -> (i32, i32) {
    %c0_i32 = arith.constant 0 : i32
    %c0_i32_0 = arith.constant 0 : i32
    %c0_i32_1 = arith.constant 0 : i32
    return %c0_i32, %c0_i32_0 : i32, i32
  }
  func.func @transform_4(%arg0: i32) -> (i32, i32) {
    %c0_i32 = arith.constant 0 : i32
    %c0_i32_0 = arith.constant 0 : i32
    %c0_i32_1 = arith.constant 0 : i32
    return %c0_i32, %c0_i32_0 : i32, i32
  }
  func.func @transform_5(%arg0: i32) -> (i32, i32) {
    %c0_i32 = arith.constant 0 : i32
    %c0_i32_0 = arith.constant 0 : i32
    %c0_i32_1 = arith.constant 0 : i32
    return %c0_i32, %c0_i32_0 : i32, i32
  }
  func.func @transform_6(%arg0: i32) -> (i32, i32) {
    %c0_i32 = arith.constant 0 : i32
    %c0_i32_0 = arith.constant 0 : i32
    %c0_i32_1 = arith.constant 0 : i32
    return %c0_i32, %c0_i32_0 : i32, i32
  }
  func.func @transform_7(%arg0: i32) -> (i32, i32) {
    %c0_i32 = arith.constant 0 : i32
    %c0_i32_0 = arith.constant 0 : i32
    %c0_i32_1 = arith.constant 0 : i32
    return %c0_i32, %c0_i32_0 : i32, i32
  }
  func.func @transform_8(%arg0: i32) -> (i32, i32) {
    %c0_i32 = arith.constant 0 : i32
    %c0_i32_0 = arith.constant 0 : i32
    %c0_i32_1 = arith.constant 0 : i32
    return %c0_i32, %c0_i32_0 : i32, i32
  }
  func.func @transform_9(%arg0: i32) -> (i32, i32) {
    %c0_i32 = arith.constant 0 : i32
    %c0_i32_0 = arith.constant 0 : i32
    return %arg0, %c0_i32 : i32, i32
  }
}

</mosaic_0001>

<llo_original>
// kernel: tpu_custom_call.1
$region0: #{tpu_custom_call.1}
  #allocation0 [shape = 'u32[]', space=smem, size = 0x4, offset = 0x4, fixed_abs, tag = 'smem constant byte address 0x4 - core index']
  #allocation1 [shape = 'u32[72,128]{1,0:T(1,128)}', space=vmem, size = 0x9000, scoped, tag = 'internal scratch']
  #allocation2 [shape = 'f32[1,1]{1,0:T(1,128)S(6)}', space=smem, size = 0x200, scoped, tag = 'scoped memory for tpu_custom_call.1']
  %s0 = inlined_call_operand.hbm [shape: f32[20,32], index: 0, kind: input, shape index: {}]
  %s1 = inlined_call_operand.vmem [shape: f32[20,8], index: 1, kind: input, shape index: {}]
  %s2 = inlined_call_operand.vmem [shape: f32[32,32], index: 2, kind: input, shape index: {}]
  %s3 = inlined_call_operand.hbm [shape: f32[8,32], index: 3, kind: input, shape index: {}]
  %s4 = inlined_call_operand.vmem [shape: f32[1,32], index: 4, kind: input, shape index: {}]
  %s5 = inlined_call_operand.hbm [shape: f32[32,32], index: 5, kind: input, shape index: {}]
  %s6 = inlined_call_operand.vmem [shape: f32[1,32], index: 6, kind: input, shape index: {}]
  %s7 = inlined_call_operand.vmem [shape: f32[1,32], index: 7, kind: input, shape index: {}]
  %s8 = inlined_call_operand.<no memory space> [shape: f32[1,1], index: 8, kind: input, shape index: {}]
  %s9 = inlined_call_operand.vmem [shape: f32[20,1], index: 9, kind: output, shape index: {}]
  %s10 = sld [smem:[#allocation0]]
  $region129: #{tpu_custom_call.1} parent=0
    _
  %s12 = ssub.s32 1, %s10
  %s13 = scalar_select 0, %s12, %s10
  %14 = sst [smem:[#allocation2]] %s8
  $region1: #{tpu_custom_call.1} parent=0
    #allocation3 [shape = 'u8[16384]{0}', space=vmem, size = 0x4000, scoped, tag = 'input window, operand 0']
    #allocation4 [shape = 's32[2]{0}', space=sflag, size = 0x8, scoped, tag = 'scoped memory for tpu_custom_call.1']
    #allocation5 [shape = 'u8[4096]{0}', space=vmem, size = 0x1000, scoped, tag = 'input window, operand 3, single buffered']
    #allocation6 [shape = 's32[1]{0}', space=sflag, size = 0x4, scoped, tag = 'scoped memory for tpu_custom_call.1']
    #allocation7 [shape = 'u8[16384]{0}', space=vmem, size = 0x4000, scoped, tag = 'input window, operand 5, single buffered']
    #allocation8 [shape = 'u8[16384]{0}', space=vmem, size = 0x4000, scoped, tag = 'output window, operand 0']
    %15 = vsyncpa [#allocation4], 0
    %s16 = scalar_lea.sflag [#allocation4], 1
    %17 = vsyncpa %s16, 0
    %18 = vsyncpa [#allocation6], 0
    loop: start=0, step=1, limit=4
    $region2: #{tpu_custom_call.1} parent=1 // loop_pre_header
      _
    $region3: #{tpu_custom_call.1} parent=1 // loop_header
      %s20 = sphi 0, %s24
      %p21 = scmp.ge.s32.totalorder %s20, 4
      %s30 = sphi 0, %s32
      %s33 = sphi 0, %s30
      %s34 = sphi 0, %s33
      %s50 = sphi 0, %s34
      %s56 = sphi 0, %s58
      %s59 = sphi 0, %s56
      %s60 = sphi 0, %s59
      %s76 = sphi 0, %s60
      %s80 = sphi 0, %s80
      %s82 = sphi 0, %s80
      %s83 = sphi 0, %s82
      %s97 = sphi 0, %s83
      %s101 = sphi 0, %s101
      %s103 = sphi 0, %s101
      %s104 = sphi 0, %s103
      %s118 = sphi 0, %s104
      %s122 = sphi 0, %s122
      %s124 = sphi 0, %s122
      %s125 = sphi 0, %s124
      %s139 = sphi 0, %s125
      %s143 = sphi 0, %s143
      %s145 = sphi 0, %s143
      %s146 = sphi 0, %s145
      %s160 = sphi 0, %s146
      %s164 = sphi 0, %s164
      %s166 = sphi 0, %s164
      %s167 = sphi 0, %s166
      %s181 = sphi 0, %s167
      %s185 = sphi 0, %s185
      %s187 = sphi 0, %s185
      %s188 = sphi 0, %s187
      %s202 = sphi 0, %s188
      %s206 = sphi 0, %s206
      %s208 = sphi 0, %s206
      %s209 = sphi 0, %s208
      %s223 = sphi 0, %s209
      %s229 = sphi 0, %s231
      %s232 = sphi 0, %s229
      %s233 = sphi 0, %s232
      %s249 = sphi 0, %s233
    $region4: #{tpu_custom_call.1} parent=1 // loop_header_branch
      %23 = sbr.rel (%p21) target = $region8
    $region5: #{tpu_custom_call.1} parent=1 // loop_body
      %s25 = ssub.s32 %s20, 1
      %s26 = ssub.s32 %s20, 2
      %s27 = sadd.s32 %s20, 1
      %s28 = ssub.s32 %s20, %s27
      %p29 = scmp.eq.s32.totalorder %s28, 0
      %s31 = sadd.s32 %s30, 1
      %s32 = scalar_select %p29, %s30, %s31
      %p35 = pneg %p29
      %p36 = scmp.eq.s32.totalorder %s20, 1
      %p37 = por %p35, %p36
      %p38 = scmp.ne.s32.totalorder %s30, %s33
      %p39 = scmp.eq.s32.totalorder %s20, 0
      %p40 = por %p38, %p39
      %p41 = scmp.ne.s32.totalorder %s30, %s33
      %p42 = scmp.eq.s32.totalorder %s25, 1
      %p43 = por %p41, %p42
      %p44 = scmp.ne.s32.totalorder %s33, %s34
      %p45 = scmp.eq.s32.totalorder %s25, 0
      %p46 = por %p44, %p45
      %p47 = scmp.ne.s32.totalorder %s33, %s34
      %p48 = scmp.eq.s32.totalorder %s26, 1
      %p49 = por %p47, %p48
      %p51 = scmp.ne.s32.totalorder %s34, %s50
      %p52 = scmp.eq.s32.totalorder %s26, 0
      %p53 = por %p51, %p52
      %s54 = ssub.s32 %s20, %s27
      %p55 = scmp.eq.s32.totalorder %s54, 0
      %s57 = sadd.s32 %s56, 1
      %s58 = scalar_select %p55, %s56, %s57
      %p61 = pneg %p55
      %p62 = scmp.eq.s32.totalorder %s20, 1
      %p63 = por %p61, %p62
      %p64 = scmp.ne.s32.totalorder %s56, %s59
      %p65 = scmp.eq.s32.totalorder %s20, 0
      %p66 = por %p64, %p65
      %p67 = scmp.ne.s32.totalorder %s56, %s59
      %p68 = scmp.eq.s32.totalorder %s25, 1
      %p69 = por %p67, %p68
      %p70 = scmp.ne.s32.totalorder %s59, %s60
      %p71 = scmp.eq.s32.totalorder %s25, 0
      %p72 = por %p70, %p71
      %p73 = scmp.ne.s32.totalorder %s59, %s60
      %p74 = scmp.eq.s32.totalorder %s26, 1
      %p75 = por %p73, %p74
      %p77 = scmp.ne.s32.totalorder %s60, %s76
      %p78 = scmp.eq.s32.totalorder %s26, 0
      %p79 = por %p77, %p78
      %s81 = sadd.s32 %s80, 1
      %p84 = scmp.eq.s32.totalorder %s20, 1
      %p85 = scmp.ne.s32.totalorder %s80, %s82
      %p86 = scmp.eq.s32.totalorder %s20, 0
      %p87 = por %p85, %p86
      %p88 = scmp.ne.s32.totalorder %s80, %s82
      %p89 = scmp.eq.s32.totalorder %s25, 1
      %p90 = por %p88, %p89
      %p91 = scmp.ne.s32.totalorder %s82, %s83
      %p92 = scmp.eq.s32.totalorder %s25, 0
      %p93 = por %p91, %p92
      %p94 = scmp.ne.s32.totalorder %s82, %s83
      %p95 = scmp.eq.s32.totalorder %s26, 1
      %p96 = por %p94, %p95
      %p98 = scmp.ne.s32.totalorder %s83, %s97
      %p99 = scmp.eq.s32.totalorder %s26, 0
      %p100 = por %p98, %p99
      %s102 = sadd.s32 %s101, 1
      %p105 = scmp.eq.s32.totalorder %s20, 1
      %p106 = scmp.ne.s32.totalorder %s101, %s103
      %p107 = scmp.eq.s32.totalorder %s20, 0
      %p108 = por %p106, %p107
      %p109 = scmp.ne.s32.totalorder %s101, %s103
      %p110 = scmp.eq.s32.totalorder %s25, 1
      %p111 = por %p109, %p110
      %p112 = scmp.ne.s32.totalorder %s103, %s104
      %p113 = scmp.eq.s32.totalorder %s25, 0
      %p114 = por %p112, %p113
      %p115 = scmp.ne.s32.totalorder %s103, %s104
      %p116 = scmp.eq.s32.totalorder %s26, 1
      %p117 = por %p115, %p116
      %p119 = scmp.ne.s32.totalorder %s104, %s118
      %p120 = scmp.eq.s32.totalorder %s26, 0
      %p121 = por %p119, %p120
      %s123 = sadd.s32 %s122, 1
      %p126 = scmp.eq.s32.totalorder %s20, 1
      %p127 = scmp.ne.s32.totalorder %s122, %s124
      %p128 = scmp.eq.s32.totalorder %s20, 0
      %p129 = por %p127, %p128
      %p130 = scmp.ne.s32.totalorder %s122, %s124
      %p131 = scmp.eq.s32.totalorder %s25, 1
      %p132 = por %p130, %p131
      %p133 = scmp.ne.s32.totalorder %s124, %s125
      %p134 = scmp.eq.s32.totalorder %s25, 0
      %p135 = por %p133, %p134
      %p136 = scmp.ne.s32.totalorder %s124, %s125
      %p137 = scmp.eq.s32.totalorder %s26, 1
      %p138 = por %p136, %p137
      %p140 = scmp.ne.s32.totalorder %s125, %s139
      %p141 = scmp.eq.s32.totalorder %s26, 0
      %p142 = por %p140, %p141
      %s144 = sadd.s32 %s143, 1
      %p147 = scmp.eq.s32.totalorder %s20, 1
      %p148 = scmp.ne.s32.totalorder %s143, %s145
      %p149 = scmp.eq.s32.totalorder %s20, 0
      %p150 = por %p148, %p149
      %p151 = scmp.ne.s32.totalorder %s143, %s145
      %p152 = scmp.eq.s32.totalorder %s25, 1
      %p153 = por %p151, %p152
      %p154 = scmp.ne.s32.totalorder %s145, %s146
      %p155 = scmp.eq.s32.totalorder %s25, 0
      %p156 = por %p154, %p155
      %p157 = scmp.ne.s32.totalorder %s145, %s146
      %p158 = scmp.eq.s32.totalorder %s26, 1
      %p159 = por %p157, %p158
      %p161 = scmp.ne.s32.totalorder %s146, %s160
      %p162 = scmp.eq.s32.totalorder %s26, 0
      %p163 = por %p161, %p162
      %s165 = sadd.s32 %s164, 1
      %p168 = scmp.eq.s32.totalorder %s20, 1
      %p169 = scmp.ne.s32.totalorder %s164, %s166
      %p170 = scmp.eq.s32.totalorder %s20, 0
      %p171 = por %p169, %p170
      %p172 = scmp.ne.s32.totalorder %s164, %s166
      %p173 = scmp.eq.s32.totalorder %s25, 1
      %p174 = por %p172, %p173
      %p175 = scmp.ne.s32.totalorder %s166, %s167
      %p176 = scmp.eq.s32.totalorder %s25, 0
      %p177 = por %p175, %p176
      %p178 = scmp.ne.s32.totalorder %s166, %s167
      %p179 = scmp.eq.s32.totalorder %s26, 1
      %p180 = por %p178, %p179
      %p182 = scmp.ne.s32.totalorder %s167, %s181
      %p183 = scmp.eq.s32.totalorder %s26, 0
      %p184 = por %p182, %p183
      %s186 = sadd.s32 %s185, 1
      %p189 = scmp.eq.s32.totalorder %s20, 1
      %p190 = scmp.ne.s32.totalorder %s185, %s187
      %p191 = scmp.eq.s32.totalorder %s20, 0
      %p192 = por %p190, %p191
      %p193 = scmp.ne.s32.totalorder %s185, %s187
      %p194 = scmp.eq.s32.totalorder %s25, 1
      %p195 = por %p193, %p194
      %p196 = scmp.ne.s32.totalorder %s187, %s188
      %p197 = scmp.eq.s32.totalorder %s25, 0
      %p198 = por %p196, %p197
      %p199 = scmp.ne.s32.totalorder %s187, %s188
      %p200 = scmp.eq.s32.totalorder %s26, 1
      %p201 = por %p199, %p200
      %p203 = scmp.ne.s32.totalorder %s188, %s202
      %p204 = scmp.eq.s32.totalorder %s26, 0
      %p205 = por %p203, %p204
      %s207 = sadd.s32 %s206, 1
      %p210 = scmp.eq.s32.totalorder %s20, 1
      %p211 = scmp.ne.s32.totalorder %s206, %s208
      %p212 = scmp.eq.s32.totalorder %s20, 0
      %p213 = por %p211, %p212
      %p214 = scmp.ne.s32.totalorder %s206, %s208
      %p215 = scmp.eq.s32.totalorder %s25, 1
      %p216 = por %p214, %p215
      %p217 = scmp.ne.s32.totalorder %s208, %s209
      %p218 = scmp.eq.s32.totalorder %s25, 0
      %p219 = por %p217, %p218
      %p220 = scmp.ne.s32.totalorder %s208, %s209
      %p221 = scmp.eq.s32.totalorder %s26, 1
      %p222 = por %p220, %p221
      %p224 = scmp.ne.s32.totalorder %s209, %s223
      %p225 = scmp.eq.s32.totalorder %s26, 0
      %p226 = por %p224, %p225
      %s227 = ssub.s32 %s20, %s27
      %p228 = scmp.eq.s32.totalorder %s227, 0
      %s230 = sadd.s32 %s229, 1
      %s231 = scalar_select %p228, %s229, %s230
      %p234 = pneg %p228
      %p235 = scmp.eq.s32.totalorder %s20, 1
      %p236 = por %p234, %p235
      %p237 = scmp.ne.s32.totalorder %s229, %s232
      %p238 = scmp.eq.s32.totalorder %s20, 0
      %p239 = por %p237, %p238
      %p240 = scmp.ne.s32.totalorder %s229, %s232
      %p241 = scmp.eq.s32.totalorder %s25, 1
      %p242 = por %p240, %p241
      %p243 = scmp.ne.s32.totalorder %s232, %s233
      %p244 = scmp.eq.s32.totalorder %s25, 0
      %p245 = por %p243, %p244
      %p246 = scmp.ne.s32.totalorder %s232, %s233
      %p247 = scmp.eq.s32.totalorder %s26, 1
      %p248 = por %p246, %p247
      %p250 = scmp.ne.s32.totalorder %s233, %s249
      %p251 = scmp.eq.s32.totalorder %s26, 0
      %p252 = por %p250, %p251
      %p253 = scmp.le.s32.totalorder 1, %s20
      %p254 = scmp.lt.s32.totalorder %s20, 3
      %p255 = pnand %p253, %p254
      %p256 = pneg %p255
      // Predicated region
      $region9: #{tpu_custom_call.1} parent=5 // pred_check
        _
      $region10: #{tpu_custom_call.1} parent=5 // pred_check_branch
        %258 = sbr.rel (%p255) target = $region12
      $region11: #{tpu_custom_call.1} parent=5 // pred_region
        %s259 = ssub.s32 %s20, 1
        // Predicated region
        $region13: #{tpu_custom_call.1} parent=11 // pred_check
          %p260 = pneg %p93
        $region14: #{tpu_custom_call.1} parent=11 // pred_check_branch
          %262 = sbr.rel (%p260) target = $region16
        $region15: #{tpu_custom_call.1} parent=11 // pred_region
          _
        $region16: #{tpu_custom_call.1} parent=11 // pred_fallthru
          _
        // Predicated region
        $region17: #{tpu_custom_call.1} parent=11 // pred_check
          %p263 = pneg %p114
        $region18: #{tpu_custom_call.1} parent=11 // pred_check_branch
          %265 = sbr.rel (%p263) target = $region20
        $region19: #{tpu_custom_call.1} parent=11 // pred_region
          %267 = vsyncadd [#allocation6], 0
          %s269 = sshll.u32 %s3, 4
          %s270 = int_to_ptr.hbm [resolvable:$true] %s269
          %s271 = sshll.u32 [#allocation5], 4
          %s272 = int_to_ptr.vmem [resolvable:$true] %s271
          %274 = dma.hbm_to_vmem [thread:$0]  %s270, 128, %s272, [#allocation6]
        $region20: #{tpu_custom_call.1} parent=11 // pred_fallthru
          _
        // Predicated region
        $region21: #{tpu_custom_call.1} parent=11 // pred_check
          %p275 = pneg %p135
        $region22: #{tpu_custom_call.1} parent=11 // pred_check_branch
          %277 = sbr.rel (%p275) target = $region24
        $region23: #{tpu_custom_call.1} parent=11 // pred_region
          _
        $region24: #{tpu_custom_call.1} parent=11 // pred_fallthru
          _
        // Predicated region
        $region25: #{tpu_custom_call.1} parent=11 // pred_check
          %p278 = pneg %p156
        $region26: #{tpu_custom_call.1} parent=11 // pred_check_branch
          %280 = sbr.rel (%p278) target = $region28
        $region27: #{tpu_custom_call.1} parent=11 // pred_region
          %282 = vsyncadd [#allocation6], 0
          %s283 = sshll.u32 %s5, 4
          %s284 = int_to_ptr.hbm [resolvable:$true] %s283
          %s285 = sshll.u32 [#allocation7], 4
          %s286 = int_to_ptr.vmem [resolvable:$true] %s285
          %291 = dma.hbm_to_vmem [thread:$0]  %s284, 512, %s286, [#allocation6], 128, 128, 8
        $region28: #{tpu_custom_call.1} parent=11 // pred_fallthru
          _
        // Predicated region
        $region29: #{tpu_custom_call.1} parent=11 // pred_check
          %p292 = pneg %p177
        $region30: #{tpu_custom_call.1} parent=11 // pred_check_branch
          %294 = sbr.rel (%p292) target = $region32
        $region31: #{tpu_custom_call.1} parent=11 // pred_region
          _
        $region32: #{tpu_custom_call.1} parent=11 // pred_fallthru
          _
        // Predicated region
        $region33: #{tpu_custom_call.1} parent=11 // pred_check
          %p295 = pneg %p198
        $region34: #{tpu_custom_call.1} parent=11 // pred_check_branch
          %297 = sbr.rel (%p295) target = $region36
        $region35: #{tpu_custom_call.1} parent=11 // pred_region
          _
        $region36: #{tpu_custom_call.1} parent=11 // pred_fallthru
          _
        // Predicated region
        $region37: #{tpu_custom_call.1} parent=11 // pred_check
          %p298 = pneg %p219
        $region38: #{tpu_custom_call.1} parent=11 // pred_check_branch
          %300 = sbr.rel (%p298) target = $region40
        $region39: #{tpu_custom_call.1} parent=11 // pred_region
          _
        $region40: #{tpu_custom_call.1} parent=11 // pred_fallthru
          _
      $region12: #{tpu_custom_call.1} parent=5 // pred_fallthru
        _
      %p301 = scmp.lt.s32.totalorder %s20, 2
      // Predicated region
      $region41: #{tpu_custom_call.1} parent=5 // pred_check
        %p302 = pneg %p301
      $region42: #{tpu_custom_call.1} parent=5 // pred_check_branch
        %304 = sbr.rel (%p302) target = $region44
      $region43: #{tpu_custom_call.1} parent=5 // pred_region
        // Predicated region
        $region45: #{tpu_custom_call.1} parent=43 // pred_check
          %p305 = pneg %p40
        $region46: #{tpu_custom_call.1} parent=43 // pred_check_branch
          %307 = sbr.rel (%p305) target = $region48
        $region47: #{tpu_custom_call.1} parent=43 // pred_region
          %s308 = sand.u32 %s30, 1
          %s309 = scalar_lea.sflag [#allocation4], %s308
          %s310 = sand.u32 %s30, 1
          %s311 = smul.addr %s310, 16
          %s312 = scalar_lea.vmem [#allocation3], %s311
          %s313 = smul.u32 2, %s20
          %s314 = ssub.s32 3, %s313
          %p315 = scmp.lt.s32.totalorder %s314, 2
          %s316 = scalar_select %p315, %s314, 2
          %s317 = smul.u32 8, %s316
          %s318 = ssub.s32 16, %s317
          %s319 = sshll.u32 %s318, 4
          %320 = vsyncadd %s309, %s319
          %p321 = scmp.ne.s32.totalorder 0, %s317
          %s322 = smul.addr %s313, 8
          %s323 = scalar_lea.hbm %s0, %s322
          %s324 = smul.u32 8, %s316
          %s325 = sshll.u32 %s323, 4
          %s326 = int_to_ptr.hbm [resolvable:$true] %s325
          %s327 = sshll.u32 %s312, 4
          %s328 = int_to_ptr.vmem [resolvable:$true] %s327
          %s329 = sshll.u32 %s324, 4
          %333 = dma.hbm_to_vmem [thread:$0]  (%p321), %s326, %s329, %s328, %s309, 128, 128, 8
        $region48: #{tpu_custom_call.1} parent=43 // pred_fallthru
          _
        // Predicated region
        $region49: #{tpu_custom_call.1} parent=43 // pred_check
          %p334 = pneg %p66
        $region50: #{tpu_custom_call.1} parent=43 // pred_check_branch
          %336 = sbr.rel (%p334) target = $region52
        $region51: #{tpu_custom_call.1} parent=43 // pred_region
          %s337 = smul.u32 2, %s20
          %s338 = ssub.s32 3, %s337
          %p339 = scmp.lt.s32.totalorder %s338, 2
          %s340 = scalar_select %p339, %s338, 2
          %s341 = smul.u32 8, %s340
          %p342 = scmp.lt.s32.totalorder %s337, 2
          %s343 = scalar_select %p342, %s337, 2
          %s344 = smul.addr %s343, 8
          %s345 = scalar_lea.vmem %s1, %s344
          %s346 = smul.u32 2, %s20
          %s347 = ssub.s32 3, %s346
          %p348 = scmp.lt.s32.totalorder %s347, 2
          %s349 = scalar_select %p348, %s347, 2
          %s350 = smul.u32 8, %s349
        $region52: #{tpu_custom_call.1} parent=43 // pred_fallthru
          _
      $region44: #{tpu_custom_call.1} parent=5 // pred_fallthru
        _
      %p351 = scmp.le.s32.totalorder 1, %s20
      %p352 = scmp.lt.s32.totalorder %s20, 3
      %p353 = pnand %p351, %p352
      %p354 = pneg %p353
      // Predicated region
      $region53: #{tpu_custom_call.1} parent=5 // pred_check
        _
      $region54: #{tpu_custom_call.1} parent=5 // pred_check_branch
        %356 = sbr.rel (%p353) target = $region56
      $region55: #{tpu_custom_call.1} parent=5 // pred_region
        %s357 = ssub.s32 %s20, 1
        %s358 = sand.u32 %s33, 1
        %s359 = scalar_lea.sflag [#allocation4], %s358
        %s360 = sand.u32 %s33, 1
        %s361 = smul.addr %s360, 16
        %s362 = scalar_lea.vmem [#allocation3], %s361
        // Predicated region
        $region57: #{tpu_custom_call.1} parent=55 // pred_check
          %p363 = pneg %p46
        $region58: #{tpu_custom_call.1} parent=55 // pred_check_branch
          %365 = sbr.rel (%p363) target = $region60
        $region59: #{tpu_custom_call.1} parent=55 // pred_region
          %367 = dma.done %s359, 256
        $region60: #{tpu_custom_call.1} parent=55 // pred_fallthru
          _
        // Predicated region
        $region61: #{tpu_custom_call.1} parent=55 // pred_check
          %p368 = pneg %p114
        $region62: #{tpu_custom_call.1} parent=55 // pred_check_branch
          %370 = sbr.rel (%p368) target = $region64
        $region63: #{tpu_custom_call.1} parent=55 // pred_region
          %372 = dma.done [#allocation6], 128
        $region64: #{tpu_custom_call.1} parent=55 // pred_fallthru
          _
        // Predicated region
        $region65: #{tpu_custom_call.1} parent=55 // pred_check
          %p373 = pneg %p156
        $region66: #{tpu_custom_call.1} parent=55 // pred_check_branch
          %375 = sbr.rel (%p373) target = $region68
        $region67: #{tpu_custom_call.1} parent=55 // pred_region
          %377 = dma.done [#allocation6], 512
        $region68: #{tpu_custom_call.1} parent=55 // pred_fallthru
          _
        %s378 = sand.u32 %s33, 1
        %s379 = scalar_lea.sflag [#allocation4], %s378
        %s380 = sand.u32 %s33, 1
        %s381 = smul.addr %s380, 16
        %s382 = scalar_lea.vmem [#allocation3], %s381
        %p383 = pneg %p46
        %p384 = pneg %p43
        %s385 = smul.u32 2, %s25
        %s386 = ssub.s32 3, %s385
        %p387 = scmp.lt.s32.totalorder %s386, 2
        %s388 = scalar_select %p387, %s386, 2
        %s389 = smul.u32 8, %s388
        %p390 = scmp.lt.s32.totalorder %s385, 2
        %s391 = scalar_select %p390, %s385, 2
        %s392 = smul.addr %s391, 8
        %s393 = scalar_lea.vmem %s1, %s392
        %p394 = pneg %p72
        %p395 = pneg %p69
        %p396 = pneg %p93
        %p397 = pneg %p90
        %p398 = pneg %p114
        %p399 = pneg %p111
        %p400 = pneg %p135
        %p401 = pneg %p132
        %p402 = pneg %p156
        %p403 = pneg %p153
        %p404 = pneg %p177
        %p405 = pneg %p174
        %p406 = pneg %p198
        %p407 = pneg %p195
        %p408 = pneg %p219
        %p409 = pneg %p216
        %p410 = pneg %p245
        %p411 = pneg %p242
        %s412 = sand.u32 %s232, 1
        %s413 = sand.u32 %s232, 1
        %s414 = smul.addr %s413, 16
        %s415 = scalar_lea.vmem [#allocation8], %s414
        %s416 = smul.u32 2, %s25
        %s417 = ssub.s32 3, %s416
        %p418 = scmp.lt.s32.totalorder %s417, 2
        %s419 = scalar_select %p418, %s417, 2
        %s420 = smul.u32 8, %s419
        %s421 = smul.u32 2, %s25
        %s422 = ssub.s32 3, %s421
        %p423 = scmp.lt.s32.totalorder %s422, 2
        %s424 = scalar_select %p423, %s422, 2
        %s425 = smul.u32 8, %s424
        %p426 = scmp.lt.s32.totalorder %s421, 2
        %s427 = scalar_select %p426, %s421, 2
        %s428 = smul.addr %s427, 8
        %s429 = scalar_lea.vmem %s1, %s428
        %s430 = smul.u32 2, %s25
        %s431 = ssub.s32 3, %s430
        %p432 = scmp.lt.s32.totalorder %s431, 2
        %s433 = scalar_select %p432, %s431, 2
        %s434 = smul.u32 8, %s433
        %s435 = smul.u32 2, %s25
        %s436 = ssub.s32 3, %s435
        %p437 = scmp.lt.s32.totalorder %s436, 2
        %s438 = scalar_select %p437, %s436, 2
        %s439 = smul.u32 8, %s438
        %v440 = vld [vmem:[%s362] sm:$0xff]
        %v441 = vld [vmem:[%s362 + $0x8] sm:$0xff]
        %v442 = vld [vmem:[%s2] sm:$0xff]
        %v443 = vld [vmem:[%s2 + $0x8] sm:$0xff]
        %v444 = vld [vmem:[%s2 + $0x10] sm:$0xff]
        %v445 = vld [vmem:[%s2 + $0x18] sm:$0xff]
        %v446 = vld [vmem:[%s429] sm:$0xff]
        %v447 = vld [vmem:[%s429 + $0x8] sm:$0xff]
        %v448 = vld [vmem:[#allocation5] sm:$0xff]
        %vm449 = vcmask 64512
        %v451 = vsel %vm449, %v446, 0
        %v454 = vsel %vm449, %v447, 0
        %456 = vmatpush.msra.mxu0 0.0
        %457 = vmatpush.msra.mxu0 0.0
        %458 = vmatpush.msra.mxu0 0.0
        %459 = vmatpush.msra.mxu0 0.0
        %460 = vmatpush.msra.mxu0 0.0
        %461 = vmatpush.msra.mxu0 0.0
        %462 = vmatpush.msra.mxu0 0.0
        %463 = vmatpush.msra.mxu0 0.0
        %464 = vmatpush.msra.mxu0 0.0
        %465 = vmatpush.msra.mxu0 0.0
        %466 = vmatpush.msra.mxu0 0.0
        %467 = vmatpush.msra.mxu0 0.0
        %468 = vmatpush.msra.mxu0 0.0
        %469 = vmatpush.msra.mxu0 0.0
        %470 = vmatpush.msra.mxu0 0.0
        %471 = vmatpush.msra.mxu0 %v448
        %472 = vmatmul.f32.gmra.mxu0 %v451
        %v473 = vpop.f32.mrf.mxu0
        %v474 = vadd.f32 0.0, %v473
        %475 = vmatmul.f32.gmra.mxu0 %v454
        %v476 = vpop.f32.mrf.mxu0
        %v477 = vadd.f32 0.0, %v476
        %478 = vdwg.mxu0
        %vm479 = vcmask 261120
        %v481 = vsel %vm479, %v440, 0
        %v484 = vsel %vm479, %v441, 0
        %486 = vmatpush.msra.mxu0 0.0
        %487 = vmatpush.msra.mxu0 0.0
        %488 = vmatpush.msra.mxu0 0.0
        %489 = vmatpush.msra.mxu0 0.0
        %490 = vmatpush.msra.mxu0 0.0
        %491 = vmatpush.msra.mxu0 0.0
        %492 = vmatpush.msra.mxu0 0.0
        %493 = vmatpush.msra.mxu0 0.0
        %494 = vmatpush.msra.mxu0 0.0
        %495 = vmatpush.msra.mxu0 0.0
        %496 = vmatpush.msra.mxu0 0.0
        %497 = vmatpush.msra.mxu0 0.0
        %498 = vmatpush.msra.mxu0 %v445
        %499 = vmatpush.msra.mxu0 %v444
        %500 = vmatpush.msra.mxu0 %v443
        %501 = vmatpush.msra.mxu0 %v442
        %502 = vmatmul.f32.gmra.mxu0 %v481
        %v503 = vpop.f32.mrf.mxu0
        %v504 = vadd.f32 %v474, %v503
        %505 = vmatmul.f32.gmra.mxu0 %v484
        %v506 = vpop.f32.mrf.mxu0
        %v507 = vadd.f32 %v477, %v506
        %508 = vdwg.mxu0
        %v509 = vld [vmem:[%s4] sm:$0x1]
        %v511 = vperm.slane %v509, 0
        %v513 = vadd.f32 %v504, %v511
        %v514 = vadd.f32 %v507, %v511
        %v515 = vmax.f32 %v513, 0.0
        %v516 = vmax.f32 %v514, 0.0
        %v517 = vld [vmem:[#allocation7] sm:$0xff]
        %v518 = vld [vmem:[#allocation7 + $0x8] sm:$0xff]
        %v519 = vld [vmem:[#allocation7 + $0x10] sm:$0xff]
        %v520 = vld [vmem:[#allocation7 + $0x18] sm:$0xff]
        %v521 = vld [vmem:[%s6] sm:$0x1]
        %v523 = vperm.slane %v521, 0
        %v526 = vsel %vm479, %v515, 0
        %v529 = vsel %vm479, %v516, 0
        %531 = vmatpush.msra.mxu0 0.0
        %532 = vmatpush.msra.mxu0 0.0
        %533 = vmatpush.msra.mxu0 0.0
        %534 = vmatpush.msra.mxu0 0.0
        %535 = vmatpush.msra.mxu0 0.0
        %536 = vmatpush.msra.mxu0 0.0
        %537 = vmatpush.msra.mxu0 0.0
        %538 = vmatpush.msra.mxu0 0.0
        %539 = vmatpush.msra.mxu0 0.0
        %540 = vmatpush.msra.mxu0 0.0
        %541 = vmatpush.msra.mxu0 0.0
        %542 = vmatpush.msra.mxu0 0.0
        %543 = vmatpush.msra.mxu0 %v520
        %544 = vmatpush.msra.mxu0 %v519
        %545 = vmatpush.msra.mxu0 %v518
        %546 = vmatpush.msra.mxu0 %v517
        %547 = vmatmul.f32.gmra.mxu0 %v526
        %v548 = vpop.f32.mrf.mxu0
        %v549 = vadd.f32 %v523, %v548
        %550 = vmatmul.f32.gmra.mxu0 %v529
        %v551 = vpop.f32.mrf.mxu0
        %v552 = vadd.f32 %v523, %v551
        %553 = vdwg.mxu0
        %v554 = vmax.f32 %v549, 0.0
        %v555 = vmax.f32 %v552, 0.0
        %v556 = vld [vmem:[%s7] sm:$0x1]
        %v558 = vperm.slane %v556, 0
        %v560 = vmul.f32 %v554, %v558
        %v561 = vmul.f32 %v555, %v558
        %v562 = vsel %vm479, %v560, 0.0
        %563 = vadd.xlane.f32.xlu0 %v562
        %v564 = vpop.xlane.xlu0 %563
        %v565 = vsel %vm479, %v561, 0.0
        %566 = vadd.xlane.f32.xlu0 %v565
        %v567 = vpop.xlane.xlu0 %566
        %s568 = sld [smem:[#allocation2]]
        %v569 = vstv %s568
        %v570 = vadd.f32 %v564, %v569
        %v571 = vadd.f32 %v567, %v569
        %vm572 = vcmask 7168
        %573 = vst.msk [vmem:[%s415] sm:$0xff] %vm572, %v570
        %574 = vst.msk [vmem:[%s415 + $0x8] sm:$0xff] %vm572, %v571
        %s575 = sand.u32 %s232, 1
        %s576 = sand.u32 %s232, 1
        %s577 = smul.addr %s576, 16
        %s578 = scalar_lea.vmem [#allocation8], %s577
        // Predicated region
        $region69: #{tpu_custom_call.1} parent=55 // pred_check
          %p579 = pneg %p242
        $region70: #{tpu_custom_call.1} parent=55 // pred_check_branch
          %581 = sbr.rel (%p579) target = $region72
        $region71: #{tpu_custom_call.1} parent=55 // pred_region
          %s582 = smul.u32 2, %s25
          %s583 = ssub.s32 3, %s582
          %p584 = scmp.lt.s32.totalorder %s583, 2
          %s585 = scalar_select %p584, %s583, 2
          %s586 = smul.u32 8, %s585
          %p587 = scmp.ne.s32.totalorder 0, %s586
          %s588 = smul.addr %s582, 8
          %s589 = scalar_lea.vmem %s9, %s588
          // Predicated region
          $region73: #{tpu_custom_call.1} parent=71 // pred_check
            %p590 = pneg %p587
          $region74: #{tpu_custom_call.1} parent=71 // pred_check_branch
            %592 = sbr.rel (%p590) target = $region76
          $region75: #{tpu_custom_call.1} parent=71 // pred_region
            // Predicated region
            $region77: #{tpu_custom_call.1} parent=75 // pred_check
              _
            $region78: #{tpu_custom_call.1} parent=75 // pred_check_branch
              %594 = sbr.rel (0) target = $region80
            $region79: #{tpu_custom_call.1} parent=75 // pred_region
              // Predicated region
              $region99: #{tpu_custom_call.1} parent=79 // pred_check
                _
              $region100: #{tpu_custom_call.1} parent=79 // pred_check_branch
                %646 = sbr.rel (0) target = $region102
              $region101: #{tpu_custom_call.1} parent=79 // pred_region
                %s647 = sshrl.u32 %s585, 1
                // While loop
                $region103: #{tpu_custom_call.1} parent=101 // loop_pre_header
                  _
                $region104: #{tpu_custom_call.1} parent=101 // loop_header
                  %s649 = sphi 0, %s651
                  %p650 = scmp.ge.s32.totalorder %s649, %s647
                  %s654 = sphi 0, %s663
                  %s655 = sphi %s578, %s666
                  %s656 = sphi %s589, %s667
                $region105: #{tpu_custom_call.1} parent=101 // loop_header_branch
                  %653 = sbr.rel (%p650) target = $region109
                $region106: #{tpu_custom_call.1} parent=101 // loop_body
                  %v657 = vld [vmem:[%s655] sm:$0xff]
                  %658 = vst [vmem:[%s656] sm:$0xff] %v657
                  %v659 = vld [vmem:[%s655 + $0x8] sm:$0xff]
                  %660 = vst [vmem:[%s656 + $0x8] sm:$0xff] %v659
                  %s661 = sadd.s32 1, %s654
                  %p662 = scmp.ge.s32.totalorder %s661, %s647
                  %s663 = scalar_select %p662, 0, %s661
                  %s664 = smul.u32 %s663, 16
                  %s665 = smul.u32 %s663, 16
                  %s666 = scalar_lea.vmem %s578, %s664 [#allocation8]
                  %s667 = scalar_lea.vmem %s589, %s665
                $region107: #{tpu_custom_call.1} parent=101 // loop_footer
                  %s651 = sadd.s32 %s649, 1
                $region108: #{tpu_custom_call.1} parent=101 // loop_footer_branch
                  %648 = sbr.rel target = $region104
                $region109: #{tpu_custom_call.1} parent=101 // loop_exit
                  _
                %s668 = sshrl.u32 %s585, 1
                %s669 = sand.u32 %s585, 1
                %s670 = smul.u32 %s668, 2
                %s671 = smul.u32 8, %s670
                %s672 = scalar_lea.vmem %s578, %s671 [#allocation8]
                %s673 = smul.u32 8, %s670
                %s674 = scalar_lea.vmem %s589, %s673
                // While loop
                $region110: #{tpu_custom_call.1} parent=101 // loop_pre_header
                  _
                $region111: #{tpu_custom_call.1} parent=101 // loop_header
                  %s676 = sphi 0, %s678
                  %p677 = scmp.ge.s32.totalorder %s676, %s669
                  %s681 = sphi 0, %s688
                  %s682 = sphi %s672, %s691
                  %s683 = sphi %s674, %s692
                $region112: #{tpu_custom_call.1} parent=101 // loop_header_branch
                  %680 = sbr.rel (%p677) target = $region116
                $region113: #{tpu_custom_call.1} parent=101 // loop_body
                  %v684 = vld [vmem:[%s682] sm:$0xff]
                  %685 = vst [vmem:[%s683] sm:$0xff] %v684
                  %s686 = sadd.s32 1, %s681
                  %p687 = scmp.ge.s32.totalorder %s686, %s669
                  %s688 = scalar_select %p687, 0, %s686
                  %s689 = smul.u32 %s688, 8
                  %s690 = smul.u32 %s688, 8
                  %s691 = scalar_lea.vmem %s672, %s689 [#allocation8]
                  %s692 = scalar_lea.vmem %s674, %s690
                $region114: #{tpu_custom_call.1} parent=101 // loop_footer
                  %s678 = sadd.s32 %s676, 1
                $region115: #{tpu_custom_call.1} parent=101 // loop_footer_branch
                  %675 = sbr.rel target = $region111
                $region116: #{tpu_custom_call.1} parent=101 // loop_exit
                  _
              $region102: #{tpu_custom_call.1} parent=79 // pred_fallthru
                _
              // Predicated region
              $region117: #{tpu_custom_call.1} parent=79 // pred_check
                _
              $region118: #{tpu_custom_call.1} parent=79 // pred_check_branch
                %694 = sbr.rel target = $region120
              $region119: #{tpu_custom_call.1} parent=79 // pred_region
                _
              $region120: #{tpu_custom_call.1} parent=79 // pred_fallthru
                _
            $region80: #{tpu_custom_call.1} parent=75 // pred_fallthru
              _
            // Predicated region
            $region81: #{tpu_custom_call.1} parent=75 // pred_check
              _
            $region82: #{tpu_custom_call.1} parent=75 // pred_check_branch
              %596 = sbr.rel target = $region84
            $region83: #{tpu_custom_call.1} parent=75 // pred_region
              %s598 = ssub.s32 256, 1
              %s599 = sshrl.u32 %s585, 1
              // While loop
              $region85: #{tpu_custom_call.1} parent=83 // loop_pre_header
                _
              $region86: #{tpu_custom_call.1} parent=83 // loop_header
                %s601 = sphi 0, %s603
                %p602 = scmp.ge.s32.totalorder %s601, %s599
                %s606 = sphi 0, %s615
                %s607 = sphi %s578, %s618
                %s608 = sphi %s589, %s619
              $region87: #{tpu_custom_call.1} parent=83 // loop_header_branch
                %605 = sbr.rel (%p602) target = $region91
              $region88: #{tpu_custom_call.1} parent=83 // loop_body
                %v609 = vld [vmem:[%s607] sm:%s598]
                %610 = vst [vmem:[%s608] sm:%s598] %v609
                %v611 = vld [vmem:[%s607 + $0x8] sm:%s598]
                %612 = vst [vmem:[%s608 + $0x8] sm:%s598] %v611
                %s613 = sadd.s32 1, %s606
                %p614 = scmp.ge.s32.totalorder %s613, %s599
                %s615 = scalar_select %p614, 0, %s613
                %s616 = smul.u32 %s615, 16
                %s617 = smul.u32 %s615, 16
                %s618 = scalar_lea.vmem %s578, %s616 [#allocation8]
                %s619 = scalar_lea.vmem %s589, %s617
              $region89: #{tpu_custom_call.1} parent=83 // loop_footer
                %s603 = sadd.s32 %s601, 1
              $region90: #{tpu_custom_call.1} parent=83 // loop_footer_branch
                %600 = sbr.rel target = $region86
              $region91: #{tpu_custom_call.1} parent=83 // loop_exit
                _
              %s620 = sshrl.u32 %s585, 1
              %s621 = sand.u32 %s585, 1
              %s622 = smul.u32 %s620, 2
              %s623 = smul.u32 8, %s622
              %s624 = scalar_lea.vmem %s578, %s623 [#allocation8]
              %s625 = smul.u32 8, %s622
              %s626 = scalar_lea.vmem %s589, %s625
              // While loop
              $region92: #{tpu_custom_call.1} parent=83 // loop_pre_header
                _
              $region93: #{tpu_custom_call.1} parent=83 // loop_header
                %s628 = sphi 0, %s630
                %p629 = scmp.ge.s32.totalorder %s628, %s621
                %s633 = sphi 0, %s640
                %s634 = sphi %s624, %s643
                %s635 = sphi %s626, %s644
              $region94: #{tpu_custom_call.1} parent=83 // loop_header_branch
                %632 = sbr.rel (%p629) target = $region98
              $region95: #{tpu_custom_call.1} parent=83 // loop_body
                %v636 = vld [vmem:[%s634] sm:%s598]
                %637 = vst [vmem:[%s635] sm:%s598] %v636
                %s638 = sadd.s32 1, %s633
                %p639 = scmp.ge.s32.totalorder %s638, %s621
                %s640 = scalar_select %p639, 0, %s638
                %s641 = smul.u32 %s640, 8
                %s642 = smul.u32 %s640, 8
                %s643 = scalar_lea.vmem %s624, %s641 [#allocation8]
                %s644 = scalar_lea.vmem %s626, %s642
              $region96: #{tpu_custom_call.1} parent=83 // loop_footer
                %s630 = sadd.s32 %s628, 1
              $region97: #{tpu_custom_call.1} parent=83 // loop_footer_branch
                %627 = sbr.rel target = $region93
              $region98: #{tpu_custom_call.1} parent=83 // loop_exit
                _
            $region84: #{tpu_custom_call.1} parent=75 // pred_fallthru
              _
          $region76: #{tpu_custom_call.1} parent=71 // pred_fallthru
            _
          %695 = vnop
        $region72: #{tpu_custom_call.1} parent=55 // pred_fallthru
          _
      $region56: #{tpu_custom_call.1} parent=5 // pred_fallthru
        _
      %p696 = scmp.le.s32.totalorder 2, %s20
      // Predicated region
      $region121: #{tpu_custom_call.1} parent=5 // pred_check
        %p697 = pneg %p696
      $region122: #{tpu_custom_call.1} parent=5 // pred_check_branch
        %699 = sbr.rel (%p697) target = $region124
      $region123: #{tpu_custom_call.1} parent=5 // pred_region
        %s700 = ssub.s32 %s20, 2
        // Predicated region
        $region125: #{tpu_custom_call.1} parent=123 // pred_check
          %p701 = pneg %p248
        $region126: #{tpu_custom_call.1} parent=123 // pred_check_branch
          %703 = sbr.rel (%p701) target = $region128
        $region127: #{tpu_custom_call.1} parent=123 // pred_region
          %s704 = sand.u32 %s233, 1
          %s705 = sand.u32 %s233, 1
          %s706 = smul.addr %s705, 16
          %s707 = scalar_lea.vmem [#allocation8], %s706
        $region128: #{tpu_custom_call.1} parent=123 // pred_fallthru
          _
      $region124: #{tpu_custom_call.1} parent=5 // pred_fallthru
        _
    $region6: #{tpu_custom_call.1} parent=1 // loop_footer
      %s24 = sadd.s32 1, %s20
    $region7: #{tpu_custom_call.1} parent=1 // loop_footer_branch
      %19 = sbr.rel target = $region3
    $region8: #{tpu_custom_call.1} parent=1 // loop_exit
      _
    %708 = vsyncpa [#allocation4], 1
    %s709 = scalar_lea.sflag [#allocation4], 1
    %710 = vsyncpa %s709, 1
    %711 = vsyncpa [#allocation6], 1

</llo_original>
